<compile_context>
chip_gen: v7x
topology: tpu7x:2x2x1
jax: 0.10.0
libtpu: 0.0.40
codegen_flags: <defaults>
</compile_context>

<pallas_src>
import functools

import jax
import jax.numpy as jnp
from jax import lax
from jax.experimental import pallas as pl
from jax.experimental.pallas import tpu as pltpu


def _round_up(x, m):
    return (x + m - 1) // m * m


def _unpack_u32_to_f32_pair(u):
    """Unpack a uint32 word holding two packed bf16 features into two f32 arrays.

    The sum-of-squares below is invariant to which half is "even"/"odd", and the
    packing is identical for all three tables, so the result does not depend on
    the bitcast endianness convention.
    """
    lo = lax.bitcast_convert_type(u << 16, jnp.float32)
    hi = lax.bitcast_convert_type(u & jnp.uint32(0xFFFF0000), jnp.float32)
    return lo, hi


def _transe_gather_score_kernel(
    # scalar-prefetch operands (SMEM)
    h_idx_ref, r_idx_ref, t_idx_ref,
    # tensor operands left in HBM (memory_space=pl.ANY)
    ent_ref, rel_ref,
    # output tile (VMEM, auto-pipelined by Pallas)
    o_ref,
    # scratch
    h_buf, r_buf, t_buf, sem,
    *, packed,
):
    block_b = h_buf.shape[0]
    base = pl.program_id(0) * block_b

    # ---- fused gather: DMA this tile's embedding rows from the HBM tables ----
    @pl.loop(0, block_b)
    def _issue(s):
        h_id = h_idx_ref[base + s]
        r_id = r_idx_ref[base + s]
        t_id = t_idx_ref[base + s]
        pltpu.make_async_copy(ent_ref.at[pl.ds(h_id, 1), :],
                              h_buf.at[pl.ds(s, 1), :], sem).start()
        pltpu.make_async_copy(rel_ref.at[pl.ds(r_id, 1), :],
                              r_buf.at[pl.ds(s, 1), :], sem).start()
        pltpu.make_async_copy(ent_ref.at[pl.ds(t_id, 1), :],
                              t_buf.at[pl.ds(s, 1), :], sem).start()

    # All row copies share one DMA semaphore and have identical byte counts,
    # so waiting once per issued copy drains every transfer.
    @pl.loop(0, block_b)
    def _wait(s):
        pltpu.make_async_copy(ent_ref.at[pl.ds(0, 1), :],
                              h_buf.at[pl.ds(s, 1), :], sem).wait()
        pltpu.make_async_copy(rel_ref.at[pl.ds(0, 1), :],
                              r_buf.at[pl.ds(s, 1), :], sem).wait()
        pltpu.make_async_copy(ent_ref.at[pl.ds(0, 1), :],
                              t_buf.at[pl.ds(s, 1), :], sem).wait()

    # ---- hot path: h + r - t, squared-L2 reduce over the embedding (lane) axis ----
    if packed:
        h_lo, h_hi = _unpack_u32_to_f32_pair(h_buf[...])
        r_lo, r_hi = _unpack_u32_to_f32_pair(r_buf[...])
        t_lo, t_hi = _unpack_u32_to_f32_pair(t_buf[...])
        d_lo = h_lo + r_lo - t_lo
        d_hi = h_hi + r_hi - t_hi
        sq = jnp.sum(d_lo * d_lo + d_hi * d_hi, axis=1, keepdims=True)
    else:
        diff = (h_buf[...].astype(jnp.float32)
                + r_buf[...].astype(jnp.float32)
                - t_buf[...].astype(jnp.float32))
        sq = jnp.sum(diff * diff, axis=1, keepdims=True)

    # Forward pass of -sqrt(0) is fine; the grad at exactly 0 is inf/NaN,
    # identical to torch.norm.  Clamp sq with an eps if used for training.
    o_ref[...] = -jnp.sqrt(sq)                       # (block_b, 1)


def transe_scores_pallas(ent_table, rel_table, head_idx, rel_idx, tail_idx,
                         *, packed, block_b=None,
                         max_block_b=1024, vmem_budget_bytes=8 * 1024 * 1024):
    """scores[b] = -||E[h[b]] + R[r[b]] - E[t[b]]||_2 with an in-kernel gather.

    ent_table / rel_table: kernel-layout tables, either uint32 (E, D/2) when
    `packed` (bf16 features bit-packed in pairs) or float32 (E, D).
    """
    E, Dk = ent_table.shape
    Rn, Dk2 = rel_table.shape
    assert Dk == Dk2 and ent_table.dtype == rel_table.dtype
    B = int(head_idx.shape[0])
    assert B >= 1

    itemsize = jnp.dtype(ent_table.dtype).itemsize
    row_bytes = 3 * Dk * itemsize            # VMEM scratch bytes per triple row
    if block_b is None:
        block_b = max(8, min(max_block_b, vmem_budget_bytes // row_bytes))
        block_b = (block_b // 8) * 8
    block_b = min(block_b, _round_up(B, 8))
    assert block_b % 8 == 0, "block_b must be a multiple of 8 (sublane tiling)"

    B_pad = _round_up(B, block_b)
    num_tiles = B_pad // block_b

    def prep_idx(idx):
        idx = jnp.asarray(idx, dtype=jnp.int32)
        if B_pad != B:
            idx = jnp.concatenate([idx, jnp.zeros((B_pad - B,), jnp.int32)])
        return idx
    # TODO(synk): for very large batches (>~64K triples) chunk the call so the
    # scalar-prefetch index arrays stay comfortably inside SMEM.
    head_idx, rel_idx, tail_idx = prep_idx(head_idx), prep_idx(rel_idx), prep_idx(tail_idx)

    kernel = functools.partial(_transe_gather_score_kernel, packed=packed)

    grid_spec = pltpu.PrefetchScalarGridSpec(
        num_scalar_prefetch=3,
        grid=(num_tiles,),
        in_specs=[pl.BlockSpec(memory_space=pl.ANY),    # entity table stays in HBM
                  pl.BlockSpec(memory_space=pl.ANY)],   # relation table stays in HBM
        out_specs=pl.BlockSpec((block_b, 1), lambda i, *_: (i, 0)),
        scratch_shapes=[
            pltpu.VMEM((block_b, Dk), ent_table.dtype),   # gathered head rows
            pltpu.VMEM((block_b, Dk), rel_table.dtype),   # gathered relation rows
            pltpu.VMEM((block_b, Dk), ent_table.dtype),   # gathered tail rows
            pltpu.SemaphoreType.DMA(()),
        ],
    )

    d_features = Dk * 2 if packed else Dk
    cost = pl.CostEstimate(
        flops=5 * B_pad * d_features,
        transcendentals=B_pad,
        bytes_accessed=3 * B_pad * Dk * itemsize + B_pad * 4 + 3 * B_pad * 4,
    )

    scores = pl.pallas_call(
        kernel,
        out_shape=jax.ShapeDtypeStruct((B_pad, 1), jnp.float32),
        grid_spec=grid_spec,
        compiler_params=pltpu.CompilerParams(
            # batch tiles are independent -> pipelined and (on v7x) spread over
            # both TensorCores when num_tiles >= 2.
            dimension_semantics=("parallel",),
            # explicit, with headroom; safe on v7x's 64 MiB physical VMEM.
            vmem_limit_bytes=32 * 1024 * 1024,
        ),
        cost_estimate=cost,
    )(head_idx, rel_idx, tail_idx, ent_table, rel_table)
    return scores[:B, 0]


class KnowledgeGraphEmbeddingJAX:
    """JAX/Pallas port of the PyTorch KnowledgeGraphEmbedding module.

    Embedding tables are stored in bfloat16 by default (perf review: halves the
    HBM gather traffic of this memory-bound scorer); all in-kernel compute and
    the returned scores are float32.  Pass storage_dtype=jnp.float32 for exact
    f32 parity with the original module.
    """

    def __init__(self, embedding_size, margin=1.0, storage_dtype=jnp.bfloat16):
        assert embedding_size % 2 == 0
        self.embedding_size = embedding_size
        self.margin = margin
        self.storage_dtype = jnp.dtype(storage_dtype)
        assert self.storage_dtype in (jnp.dtype(jnp.bfloat16), jnp.dtype(jnp.float32))
        self.entity_embeddings = None
        self.relation_embeddings = None
        self._ent_kern = None
        self._rel_kern = None

    @property
    def _packed(self):
        return self.storage_dtype == jnp.dtype(jnp.bfloat16)

    def _kernel_view(self, table):
        """Kernel-side table layout: bf16 tables are bit-packed (2 features per
        uint32) once, so the row-gather DMAs move plain 32-bit words."""
        if not self._packed:
            return table
        n, d = table.shape
        return lax.bitcast_convert_type(table.reshape(n, d // 2, 2), jnp.uint32)

    def init_embeddings(self, entity_embeddings, num_relations, *, key):
        ent = jnp.asarray(entity_embeddings, dtype=jnp.float32)
        num_entities, d = ent.shape
        assert d == self.embedding_size
        self.entity_embeddings = ent.astype(self.storage_dtype)
        # xavier_uniform_: U(-a, a), a = sqrt(6 / (fan_in + fan_out))
        a = (6.0 / (num_relations + self.embedding_size)) ** 0.5
        rel = jax.random.uniform(key, (num_relations, self.embedding_size),
                                 minval=-a, maxval=a, dtype=jnp.float32)
        self.relation_embeddings = rel.astype(self.storage_dtype)
        self._ent_kern = self._kernel_view(self.entity_embeddings)
        self._rel_kern = self._kernel_view(self.relation_embeddings)

    def forward(self, head_indices, relation_indices, tail_indices, *, block_b=None):
        return transe_scores_pallas(
            self._ent_kern, self._rel_kern,
            head_indices, relation_indices, tail_indices,
            packed=self._packed, block_b=block_b)

    def margin_loss(self, pos_scores, neg_scores):
        return jnp.mean(jax.nn.relu(self.margin - pos_scores + neg_scores))


if __name__ == "__main__":
    key = jax.random.PRNGKey(0)
    k_ent, k_rel, k_h, k_r, k_t = jax.random.split(key, 5)

    embedding_size = 128      # multiple of 128 -> full lane occupancy
    num_entities = 64
    num_relations = 8
    batch = 24                # not a multiple of block_b -> exercises padding

    # Deterministic synthetic "pretrained" entity embeddings.
    entity_init = jax.random.normal(
        k_ent, (num_entities, embedding_size), dtype=jnp.float32)

    model = KnowledgeGraphEmbeddingJAX(embedding_size, margin=1.0)
    model.init_embeddings(entity_init, num_relations, key=k_rel)

    head_idx = jax.random.randint(k_h, (batch,), 0, num_entities)
    rel_idx = jax.random.randint(k_r, (batch,), 0, num_relations)
    tail_idx = jax.random.randint(k_t, (batch,), 0, num_entities)

    # block_b=16 -> B padded 24->32, grid of 2 tiles (exercises tiling + padding).
    scores = model.forward(head_idx, rel_idx, tail_idx, block_b=16)
    scores = jax.block_until_ready(scores)

    # Pure-JAX reference on the stored (bf16) tables, f32 compute — same
    # semantics as torch.norm(p=2, dim=1) on the module's weights.
    h = jnp.take(model.entity_embeddings, head_idx, axis=0).astype(jnp.float32)
    r = jnp.take(model.relation_embeddings, rel_idx, axis=0).astype(jnp.float32)
    t = jnp.take(model.entity_embeddings, tail_idx, axis=0).astype(jnp.float32)
    ref = -jnp.linalg.norm(h + r - t, ord=2, axis=1)

    assert scores.shape == (batch,)
    assert jnp.allclose(scores, ref, atol=1e-4, rtol=1e-4), (scores, ref)

    print("KERNEL_OK")
</pallas_src>

<mosaic_0001>
module attributes {stable_mosaic.version = 11 : i64} {
  func.func @_transe_gather_score_kernel(%arg0: i32, %arg1: memref<32xi32, #tpu.memory_space<smem>>, %arg2: memref<32xi32, #tpu.memory_space<smem>>, %arg3: memref<32xi32, #tpu.memory_space<smem>>, %arg4: memref<64x64xi32, #tpu.memory_space<any>>, %arg5: memref<8x64xi32, #tpu.memory_space<any>>, %arg6: memref<16x1xf32, #tpu.memory_space<vmem>>, %arg7: memref<16x64xi32, #tpu.memory_space<vmem>>, %arg8: memref<16x64xi32, #tpu.memory_space<vmem>>, %arg9: memref<16x64xi32, #tpu.memory_space<vmem>>, %arg10: memref<!tpu.dma_semaphore, #tpu.memory_space<semaphore_mem>>) attributes {dimension_semantics = [#tpu.dimension_semantics<parallel>], iteration_bounds = array<i64: 2>, scalar_prefetch = 3 : i64, scratch_operands = 4 : i64, tpu.core_type = #tpu.core_type<tc>, window_params = [{}, {}, {transform_indices = @transform_2, window_bounds = array<i64: 16, 1>}]} {
    %c16_i32 = arith.constant 16 : i32
    %0 = arith.muli %arg0, %c16_i32 : i32
    %c0_i32 = arith.constant 0 : i32
    %c16_i32_0 = arith.constant 16 : i32
    %1 = arith.addi %c0_i32, %c16_i32_0 : i32
    %c1_i32 = arith.constant 1 : i32
    scf.for %arg11 = %c0_i32 to %1 step %c1_i32  : i32 {
      %c1_i32_19 = arith.constant 1 : i32
      %37 = arith.muli %arg11, %c1_i32_19 : i32
      %c0_i32_20 = arith.constant 0 : i32
      %38 = arith.addi %c0_i32_20, %37 : i32
      %39 = arith.addi %0, %38 : i32
      %40 = arith.index_cast %39 : i32 to index
      %41 = memref.load %arg1[%40] : memref<32xi32, #tpu.memory_space<smem>>
      %42 = arith.addi %0, %38 : i32
      %43 = arith.index_cast %42 : i32 to index
      %44 = memref.load %arg2[%43] : memref<32xi32, #tpu.memory_space<smem>>
      %45 = arith.addi %0, %38 : i32
      %46 = arith.index_cast %45 : i32 to index
      %47 = memref.load %arg3[%46] : memref<32xi32, #tpu.memory_space<smem>>
      %c0_i32_21 = arith.constant 0 : i32
      %48 = tpu.memref_slice %arg4[%41, %c0_i32_21] : memref<64x64xi32, #tpu.memory_space<any>> -> memref<1x64xi32, #tpu.memory_space<any>>
      %c0_i32_22 = arith.constant 0 : i32
      %49 = tpu.memref_slice %arg7[%38, %c0_i32_22] : memref<16x64xi32, #tpu.memory_space<vmem>> -> memref<1x64xi32, #tpu.memory_space<vmem>>
      tpu.enqueue_dma source(%48 : memref<1x64xi32, #tpu.memory_space<any>>) target(%49 : memref<1x64xi32, #tpu.memory_space<vmem>>) target_semaphore(%arg10 : memref<!tpu.dma_semaphore, #tpu.memory_space<semaphore_mem>>)
      %c0_i32_23 = arith.constant 0 : i32
      %50 = tpu.memref_slice %arg5[%44, %c0_i32_23] : memref<8x64xi32, #tpu.memory_space<any>> -> memref<1x64xi32, #tpu.memory_space<any>>
      %c0_i32_24 = arith.constant 0 : i32
      %51 = tpu.memref_slice %arg8[%38, %c0_i32_24] : memref<16x64xi32, #tpu.memory_space<vmem>> -> memref<1x64xi32, #tpu.memory_space<vmem>>
      tpu.enqueue_dma source(%50 : memref<1x64xi32, #tpu.memory_space<any>>) target(%51 : memref<1x64xi32, #tpu.memory_space<vmem>>) target_semaphore(%arg10 : memref<!tpu.dma_semaphore, #tpu.memory_space<semaphore_mem>>)
      %c0_i32_25 = arith.constant 0 : i32
      %52 = tpu.memref_slice %arg4[%47, %c0_i32_25] : memref<64x64xi32, #tpu.memory_space<any>> -> memref<1x64xi32, #tpu.memory_space<any>>
      %c0_i32_26 = arith.constant 0 : i32
      %53 = tpu.memref_slice %arg9[%38, %c0_i32_26] : memref<16x64xi32, #tpu.memory_space<vmem>> -> memref<1x64xi32, #tpu.memory_space<vmem>>
      tpu.enqueue_dma source(%52 : memref<1x64xi32, #tpu.memory_space<any>>) target(%53 : memref<1x64xi32, #tpu.memory_space<vmem>>) target_semaphore(%arg10 : memref<!tpu.dma_semaphore, #tpu.memory_space<semaphore_mem>>)
    }
    %c16_i32_1 = arith.constant 16 : i32
    %c0_i32_2 = arith.constant 0 : i32
    %c16_i32_3 = arith.constant 16 : i32
    %2 = arith.addi %c0_i32_2, %c16_i32_3 : i32
    %c1_i32_4 = arith.constant 1 : i32
    scf.for %arg11 = %c0_i32_2 to %2 step %c1_i32_4  : i32 {
      %c1_i32_19 = arith.constant 1 : i32
      %37 = arith.muli %arg11, %c1_i32_19 : i32
      %c0_i32_20 = arith.constant 0 : i32
      %38 = arith.addi %c0_i32_20, %37 : i32
      %c0_i32_21 = arith.constant 0 : i32
      %c0_i32_22 = arith.constant 0 : i32
      %39 = tpu.memref_slice %arg4[%c0_i32_21, %c0_i32_22] : memref<64x64xi32, #tpu.memory_space<any>> -> memref<1x64xi32, #tpu.memory_space<any>>
      %c0_i32_23 = arith.constant 0 : i32
      %40 = tpu.memref_slice %arg7[%38, %c0_i32_23] : memref<16x64xi32, #tpu.memory_space<vmem>> -> memref<1x64xi32, #tpu.memory_space<vmem>>
      tpu.wait_dma2 semaphore(%arg10 : memref<!tpu.dma_semaphore, #tpu.memory_space<semaphore_mem>>) src(%39 : memref<1x64xi32, #tpu.memory_space<any>>) dst(%40 : memref<1x64xi32, #tpu.memory_space<vmem>>)
      %c0_i32_24 = arith.constant 0 : i32
      %c0_i32_25 = arith.constant 0 : i32
      %41 = tpu.memref_slice %arg5[%c0_i32_24, %c0_i32_25] : memref<8x64xi32, #tpu.memory_space<any>> -> memref<1x64xi32, #tpu.memory_space<any>>
      %c0_i32_26 = arith.constant 0 : i32
      %42 = tpu.memref_slice %arg8[%38, %c0_i32_26] : memref<16x64xi32, #tpu.memory_space<vmem>> -> memref<1x64xi32, #tpu.memory_space<vmem>>
      tpu.wait_dma2 semaphore(%arg10 : memref<!tpu.dma_semaphore, #tpu.memory_space<semaphore_mem>>) src(%41 : memref<1x64xi32, #tpu.memory_space<any>>) dst(%42 : memref<1x64xi32, #tpu.memory_space<vmem>>)
      %c0_i32_27 = arith.constant 0 : i32
      %c0_i32_28 = arith.constant 0 : i32
      %43 = tpu.memref_slice %arg4[%c0_i32_27, %c0_i32_28] : memref<64x64xi32, #tpu.memory_space<any>> -> memref<1x64xi32, #tpu.memory_space<any>>
      %c0_i32_29 = arith.constant 0 : i32
      %44 = tpu.memref_slice %arg9[%38, %c0_i32_29] : memref<16x64xi32, #tpu.memory_space<vmem>> -> memref<1x64xi32, #tpu.memory_space<vmem>>
      tpu.wait_dma2 semaphore(%arg10 : memref<!tpu.dma_semaphore, #tpu.memory_space<semaphore_mem>>) src(%43 : memref<1x64xi32, #tpu.memory_space<any>>) dst(%44 : memref<1x64xi32, #tpu.memory_space<vmem>>)
    }
    %c16_i32_5 = arith.constant 16 : i32
    %c0 = arith.constant 0 : index
    %c0_6 = arith.constant 0 : index
    %3 = vector.load %arg7[%c0, %c0_6] : memref<16x64xi32, #tpu.memory_space<vmem>>, vector<16x64xi32>
    %c16_i32_7 = arith.constant 16 : i32
    %4 = vector.broadcast %c16_i32_7 : i32 to vector<16x64xi32>
    %5 = arith.shli %3, %4 : vector<16x64xi32>
    %6 = tpu.bitcast %5 : vector<16x64xi32> -> vector<16x64xf32>
    %c-65536_i32 = arith.constant -65536 : i32
    %7 = vector.broadcast %c-65536_i32 : i32 to vector<16x64xi32>
    %8 = arith.andi %3, %7 : vector<16x64xi32>
    %9 = tpu.bitcast %8 : vector<16x64xi32> -> vector<16x64xf32>
    %c0_8 = arith.constant 0 : index
    %c0_9 = arith.constant 0 : index
    %10 = vector.load %arg8[%c0_8, %c0_9] : memref<16x64xi32, #tpu.memory_space<vmem>>, vector<16x64xi32>
    %c16_i32_10 = arith.constant 16 : i32
    %11 = vector.broadcast %c16_i32_10 : i32 to vector<16x64xi32>
    %12 = arith.shli %10, %11 : vector<16x64xi32>
    %13 = tpu.bitcast %12 : vector<16x64xi32> -> vector<16x64xf32>
    %c-65536_i32_11 = arith.constant -65536 : i32
    %14 = vector.broadcast %c-65536_i32_11 : i32 to vector<16x64xi32>
    %15 = arith.andi %10, %14 : vector<16x64xi32>
    %16 = tpu.bitcast %15 : vector<16x64xi32> -> vector<16x64xf32>
    %c0_12 = arith.constant 0 : index
    %c0_13 = arith.constant 0 : index
    %17 = vector.load %arg9[%c0_12, %c0_13] : memref<16x64xi32, #tpu.memory_space<vmem>>, vector<16x64xi32>
    %c16_i32_14 = arith.constant 16 : i32
    %18 = vector.broadcast %c16_i32_14 : i32 to vector<16x64xi32>
    %19 = arith.shli %17, %18 : vector<16x64xi32>
    %20 = tpu.bitcast %19 : vector<16x64xi32> -> vector<16x64xf32>
    %c-65536_i32_15 = arith.constant -65536 : i32
    %21 = vector.broadcast %c-65536_i32_15 : i32 to vector<16x64xi32>
    %22 = arith.andi %17, %21 : vector<16x64xi32>
    %23 = tpu.bitcast %22 : vector<16x64xi32> -> vector<16x64xf32>
    %24 = arith.addf %6, %13 : vector<16x64xf32>
    %25 = arith.subf %24, %20 : vector<16x64xf32>
    %26 = arith.addf %9, %16 : vector<16x64xf32>
    %27 = arith.subf %26, %23 : vector<16x64xf32>
    %28 = arith.mulf %25, %25 : vector<16x64xf32>
    %29 = arith.mulf %27, %27 : vector<16x64xf32>
    %30 = arith.addf %28, %29 : vector<16x64xf32>
    %cst = arith.constant dense<0.000000e+00> : vector<16xf32>
    %31 = vector.multi_reduction <add>, %30, %cst [1] : vector<16x64xf32> to vector<16xf32>
    %32 = vector.shape_cast %31 : vector<16xf32> to vector<16x1xf32>
    %33 = math.sqrt %32 : vector<16x1xf32>
    %cst_16 = arith.constant 0.000000e+00 : f32
    %34 = vector.broadcast %cst_16 : f32 to vector<16x1xf32>
    %35 = arith.subf %34, %33 : vector<16x1xf32>
    %c0_17 = arith.constant 0 : index
    %c0_18 = arith.constant 0 : index
    %36 = vector.load %arg6[%c0_17, %c0_18] : memref<16x1xf32, #tpu.memory_space<vmem>>, vector<16x1xf32>
    tpu.vector_store %arg6[%c0_17, %c0_18], %35 {strides = array<i32>} : memref<16x1xf32, #tpu.memory_space<vmem>>, vector<16x1xf32>,
    return
  }
  func.func @transform_2(%arg0: i32, %arg1: memref<32xi32, #tpu.memory_space<smem>>, %arg2: memref<32xi32, #tpu.memory_space<smem>>, %arg3: memref<32xi32, #tpu.memory_space<smem>>) -> (i32, i32) {
    %c0_i32 = arith.constant 0 : i32
    %c0_i32_0 = arith.constant 0 : i32
    return %arg0, %c0_i32 : i32, i32
  }
}

</mosaic_0001>

<llo_original>
// kernel: tpu_custom_call.1
$region0: #{tpu_custom_call.1}
  #allocation0 [shape = 'u32[]', space=smem, size = 0x4, offset = 0x4, fixed_abs, tag = 'smem constant byte address 0x4 - core index']
  #allocation1 [shape = 'u32[144,128]{1,0:T(1,128)}', space=vmem, size = 0x12000, scoped, tag = 'internal scratch']
  #allocation2 [shape = 's32[16,64]{1,0:T(8,128)}', space=vmem, size = 0x2000, scoped, tag = 'scratch operand']
  #allocation3 [shape = 's32[16,64]{1,0:T(8,128)}', space=vmem, size = 0x2000, scoped, tag = 'scratch operand']
  #allocation4 [shape = 's32[16,64]{1,0:T(8,128)}', space=vmem, size = 0x2000, scoped, tag = 'scratch operand']
  #allocation5 [shape = 's32[1]{0}', space=sflag, size = 0x4, scoped, tag = 'scratch operand']
  #allocation6 [shape = 's32[1]{0}', space=sflag, size = 0x4, scoped, tag = 'scoped memory for tpu_custom_call.1']
  #allocation7 [shape = 'u8[512]{0}', space=smem, size = 0x200, scoped, tag = 'prefetched SMEM operand 0']
  #allocation8 [shape = 'u8[512]{0}', space=smem, size = 0x200, scoped, tag = 'prefetched SMEM operand 1']
  #allocation9 [shape = 'u8[512]{0}', space=smem, size = 0x200, scoped, tag = 'prefetched SMEM operand 2']
  #allocation10 [shape = 's32[]', space=sflag, size = 0x4, offset = 0, fixed_abs, tag = 'sflag constant byte address 0x0 - dummy sync flag']
  #allocation11 [shape = 's32[]', space=sflag, size = 0x4, offset = 0, fixed_abs, tag = 'sflag constant byte address 0x0 - dummy sync flag']
  #allocation12 [shape = 'u32[]', space=smem, size = 0x4, offset = 0x44, fixed_abs, tag = 'smem constant byte address 0x44 - assertion arg 0']
  #allocation13 [shape = 'u32[]', space=smem, size = 0x4, offset = 0x48, fixed_abs, tag = 'smem constant byte address 0x48 - assertion arg 1']
  #allocation14 [shape = 's32[]', space=sflag, size = 0x4, offset = 0, fixed_abs, tag = 'sflag constant byte address 0x0 - dummy sync flag']
  #allocation15 [shape = 's32[]', space=sflag, size = 0x4, offset = 0, fixed_abs, tag = 'sflag constant byte address 0x0 - dummy sync flag']
  #allocation16 [shape = 's32[]', space=sflag, size = 0x4, offset = 0, fixed_abs, tag = 'sflag constant byte address 0x0 - dummy sync flag']
  %s0 = inlined_call_operand.hbm [shape: s32[32], index: 0, kind: input, shape index: {}]
  %s1 = inlined_call_operand.vmem [shape: s32[32], index: 1, kind: input, shape index: {}]
  %s2 = inlined_call_operand.vmem [shape: s32[32], index: 2, kind: input, shape index: {}]
  %s3 = inlined_call_operand.hbm [shape: u32[64,64], index: 3, kind: input, shape index: {}]
  %s4 = inlined_call_operand.vmem [shape: u32[8,64], index: 4, kind: input, shape index: {}]
  %s5 = inlined_call_operand.vmem [shape: f32[32,1], index: 5, kind: output, shape index: {}]
  %s6 = sld [smem:[#allocation0]]
  $region77: #{tpu_custom_call.1} parent=0
    _
  %s8 = ssub.s32 1, %s6
  %s9 = scalar_select 0, %s8, %s6
  %11 = dma.hbm_to_smem %s0, 16, [#allocation7], [#allocation6]
  %s12 = sshll.u32 %s1, 4
  %s13 = int_to_ptr.vmem [resolvable:$true] %s12
  %15 = dma.vmem_to_smem %s13, 16, [#allocation8], [#allocation6]
  %s16 = sshll.u32 %s2, 4
  %s17 = int_to_ptr.vmem [resolvable:$true] %s16
  %19 = dma.vmem_to_smem %s17, 16, [#allocation9], [#allocation6]
  %20 = dma.done [#allocation6], 48
  %21 = sfence
  loop: start=0, step=1, limit=3
  $region2: #{tpu_custom_call.1} parent=0 // loop_pre_header
    _
  $region3: #{tpu_custom_call.1} parent=0 // loop_header
    %s23 = sphi 0, %s27
    %p24 = scmp.ge.s32.totalorder %s23, 3
    %s32 = sphi 0, %s34
    %s35 = sphi 0, %s32
    %s45 = sphi 0, %s35
  $region4: #{tpu_custom_call.1} parent=0 // loop_header_branch
    %26 = sbr.rel (%p24) target = $region8
  $region5: #{tpu_custom_call.1} parent=0 // loop_body
    %s28 = ssub.s32 %s23, 1
    %s29 = sadd.s32 %s23, 1
    %s30 = ssub.s32 %s23, %s29
    %p31 = scmp.eq.s32.totalorder %s30, 0
    %s33 = sadd.s32 %s32, 1
    %s34 = scalar_select %p31, %s32, %s33
    %p36 = pneg %p31
    %p37 = scmp.eq.s32.totalorder %s23, 1
    %p38 = por %p36, %p37
    %p39 = scmp.ne.s32.totalorder %s32, %s35
    %p40 = scmp.eq.s32.totalorder %s23, 0
    %p41 = por %p39, %p40
    %p42 = scmp.ne.s32.totalorder %s32, %s35
    %p43 = scmp.eq.s32.totalorder %s28, 1
    %p44 = por %p42, %p43
    %p46 = scmp.ne.s32.totalorder %s35, %s45
    %p47 = scmp.eq.s32.totalorder %s28, 0
    %p48 = por %p46, %p47
    %p49 = scmp.lt.s32.totalorder %s23, 2
    // Predicated region
    $region9: #{tpu_custom_call.1} parent=5 // pred_check
      %p50 = pneg %p49
    $region10: #{tpu_custom_call.1} parent=5 // pred_check_branch
      %52 = sbr.rel (%p50) target = $region12
    $region11: #{tpu_custom_call.1} parent=5 // pred_region
      %p53 = pneg %p41
      %p54 = pneg %p38
      %s55 = smul.u32 2, %s23
      %p56 = scmp.lt.s32.totalorder %s55, 3
      %s57 = scalar_select %p56, %s55, 3
      %s58 = smul.addr %s57, 8
      %s59 = scalar_lea.vmem %s5, %s58
      %s60 = smul.u32 2, %s23
      %p61 = scmp.lt.s32.totalorder %s60, 3
      %s62 = scalar_select %p61, %s60, 3
      %s63 = smul.addr %s62, 8
      %s64 = scalar_lea.vmem %s5, %s63
      %s65 = smul.u32 2, %s23
      %s66 = smul.u32 %s23, 16
      loop: start=0, step=1, limit=16
      $region13: #{tpu_custom_call.1} parent=11 // loop_pre_header
        _
      $region14: #{tpu_custom_call.1} parent=11 // loop_header
        %s68 = sphi 0, %s72
        %p69 = scmp.ge.s32.totalorder %s68, 16
      $region15: #{tpu_custom_call.1} parent=11 // loop_header_branch
        %71 = sbr.rel (%p69) target = $region19
      $region16: #{tpu_custom_call.1} parent=11 // loop_body
        %s73 = sadd.s32 %s66, %s68
        %s74 = sld [smem:[#allocation7 + %s73]]
        %s75 = sld [smem:[#allocation8 + %s73]]
        %s76 = sld [smem:[#allocation9 + %s73]]
        %s77 = smul.addr %s74, 16
        %s78 = scalar_lea.hbm %s3, %s77
        %s79 = scalar_lea.vmem [#allocation2], %s68
        // Predicated region
        $region20: #{tpu_custom_call.1} parent=16 // pred_check
          _
        $region21: #{tpu_custom_call.1} parent=16 // pred_check_branch
          %81 = sbr.rel target = $region23
        $region22: #{tpu_custom_call.1} parent=16 // pred_region
          %82 = sst [smem:[#allocation12]] [#allocation11]
          %83 = sst [smem:[#allocation13]] [#allocation10]
        $region23: #{tpu_custom_call.1} parent=16 // pred_fallthru
          _
        %85 = shalt.err (0)
        %s87 = sshll.u32 %s79, 4
        %s88 = int_to_ptr.vmem [resolvable:$true] %s87
        %90 = dma.hbm_to_vmem [thread:$0]  %s78, 16, %s88, [#allocation5]
        %s91 = scalar_lea.vmem %s4, %s75
        %s92 = scalar_lea.vmem [#allocation3], %s68
        %p94 = scmp.lt.u32.totalorder 1, 8
        %p95 = pneg %p94
        // Predicated region
        $region24: #{tpu_custom_call.1} parent=16 // pred_check
          _
        $region25: #{tpu_custom_call.1} parent=16 // pred_check_branch
          %97 = sbr.rel (%p94) target = $region27
        $region26: #{tpu_custom_call.1} parent=16 // pred_region
          %s112 = sand.u32 1, 7
          %p113 = scmp.eq.s32.totalorder %s112, 0
          %p114 = pneg %p113
          // Predicated region
          $region39: #{tpu_custom_call.1} parent=26 // pred_check
            _
          $region40: #{tpu_custom_call.1} parent=26 // pred_check_branch
            %116 = sbr.rel (%p113) target = $region42
          $region41: #{tpu_custom_call.1} parent=26 // pred_region
            %s117 = sand.u32 1, 7
            %s118 = ssub.s32 1, %s117
            %s119 = scalar_lea.vmem %s91, %s118
            %s120 = ssub.s32 1, %s117
            %s121 = scalar_lea.vmem %s92, %s120 [#allocation3]
            %s122 = sshllo.u32 0, %s117
            loop: start=0, step=1, limit=1
            $region43: #{tpu_custom_call.1} parent=41 // loop_pre_header
              _
            $region44: #{tpu_custom_call.1} parent=41 // loop_header
              %s124 = sphi 0, %s128
              %p125 = scmp.ge.s32.totalorder %s124, 1
              %s129 = sphi %s119, %s119
              %s130 = sphi %s121, %s121
            $region45: #{tpu_custom_call.1} parent=41 // loop_header_branch
              %127 = sbr.rel (%p125) target = $region49
            $region46: #{tpu_custom_call.1} parent=41 // loop_body
              %v131 = vld [vmem:[%s129] sm:%s122]
              %132 = vst [vmem:[%s130] sm:%s122] %v131
            $region47: #{tpu_custom_call.1} parent=41 // loop_footer
              %s128 = sadd.s32 1, %s124
            $region48: #{tpu_custom_call.1} parent=41 // loop_footer_branch
              %123 = sbr.rel target = $region44
            $region49: #{tpu_custom_call.1} parent=41 // loop_exit
              _
          $region42: #{tpu_custom_call.1} parent=26 // pred_fallthru
            _
        $region27: #{tpu_custom_call.1} parent=16 // pred_fallthru
          _
        // Predicated region
        $region28: #{tpu_custom_call.1} parent=16 // pred_check
          %p98 = pneg %p94
        $region29: #{tpu_custom_call.1} parent=16 // pred_check_branch
          %100 = sbr.rel (%p98) target = $region31
        $region30: #{tpu_custom_call.1} parent=16 // pred_region
          %s101 = sshllo.u32 0, 1
          loop: start=0, step=1, limit=1
          $region32: #{tpu_custom_call.1} parent=30 // loop_pre_header
            _
          $region33: #{tpu_custom_call.1} parent=30 // loop_header
            %s103 = sphi 0, %s107
            %p104 = scmp.ge.s32.totalorder %s103, 1
            %s108 = sphi %s91, %s91
            %s109 = sphi %s92, %s92
          $region34: #{tpu_custom_call.1} parent=30 // loop_header_branch
            %106 = sbr.rel (%p104) target = $region38
          $region35: #{tpu_custom_call.1} parent=30 // loop_body
            %v110 = vld [vmem:[%s108] sm:%s101]
            %111 = vst [vmem:[%s109] sm:%s101] %v110
          $region36: #{tpu_custom_call.1} parent=30 // loop_footer
            %s107 = sadd.s32 1, %s103
          $region37: #{tpu_custom_call.1} parent=30 // loop_footer_branch
            %102 = sbr.rel target = $region33
          $region38: #{tpu_custom_call.1} parent=30 // loop_exit
            _
        $region31: #{tpu_custom_call.1} parent=16 // pred_fallthru
          _
        // Predicated region
        $region50: #{tpu_custom_call.1} parent=16 // pred_check
          _
        $region51: #{tpu_custom_call.1} parent=16 // pred_check_branch
          %135 = sbr.rel (0) target = $region53
        $region52: #{tpu_custom_call.1} parent=16 // pred_region
          %136 = vsyncadd [#allocation5], 16
        $region53: #{tpu_custom_call.1} parent=16 // pred_fallthru
          _
        %s137 = smul.addr %s76, 16
        %s138 = scalar_lea.hbm %s3, %s137
        %s139 = scalar_lea.vmem [#allocation4], %s68
        // Predicated region
        $region54: #{tpu_custom_call.1} parent=16 // pred_check
          _
        $region55: #{tpu_custom_call.1} parent=16 // pred_check_branch
          %141 = sbr.rel target = $region57
        $region56: #{tpu_custom_call.1} parent=16 // pred_region
          %142 = sst [smem:[#allocation12]] [#allocation16]
          %143 = sst [smem:[#allocation13]] [#allocation15]
        $region57: #{tpu_custom_call.1} parent=16 // pred_fallthru
          _
        %145 = shalt.err (0)
        %s147 = sshll.u32 %s139, 4
        %s148 = int_to_ptr.vmem [resolvable:$true] %s147
        %150 = dma.hbm_to_vmem [thread:$0]  %s138, 16, %s148, [#allocation5]
      $region17: #{tpu_custom_call.1} parent=11 // loop_footer
        %s72 = sadd.s32 1, %s68
      $region18: #{tpu_custom_call.1} parent=11 // loop_footer_branch
        %67 = sbr.rel target = $region14
      $region19: #{tpu_custom_call.1} parent=11 // loop_exit
        _
      loop: start=0, step=1, limit=16
      $region58: #{tpu_custom_call.1} parent=11 // loop_pre_header
        _
      $region59: #{tpu_custom_call.1} parent=11 // loop_header
        %s152 = sphi 0, %s156
        %p153 = scmp.ge.s32.totalorder %s152, 16
      $region60: #{tpu_custom_call.1} parent=11 // loop_header_branch
        %155 = sbr.rel (%p153) target = $region64
      $region61: #{tpu_custom_call.1} parent=11 // loop_body
        %s157 = smul.u32 1, 1
        %s158 = sshll.u32 %s157, 4
        %159 = dma.done [#allocation5], %s158
        %s160 = sshll.u32 %s157, 4
        %161 = dma.done [#allocation5], %s160
        %s162 = sshll.u32 %s157, 4
        %163 = dma.done [#allocation5], %s162
      $region62: #{tpu_custom_call.1} parent=11 // loop_footer
        %s156 = sadd.s32 1, %s152
      $region63: #{tpu_custom_call.1} parent=11 // loop_footer_branch
        %151 = sbr.rel target = $region59
      $region64: #{tpu_custom_call.1} parent=11 // loop_exit
        _
      %v164 = vld [vmem:[#allocation2] sm:$0xff]
      %v165 = vld [vmem:[#allocation2 + $0x8] sm:$0xff]
      %v166 = vshll.u32 %v164, 16
      %v167 = vshll.u32 %v165, 16
      %v170 = vand.u32 %v164, 4294901760
      %v171 = vand.u32 %v165, 4294901760
      %v174 = vld [vmem:[#allocation3] sm:$0xff]
      %v175 = vld [vmem:[#allocation3 + $0x8] sm:$0xff]
      %v176 = vshll.u32 %v174, 16
      %v177 = vshll.u32 %v175, 16
      %v180 = vand.u32 %v174, 4294901760
      %v181 = vand.u32 %v175, 4294901760
      %v184 = vld [vmem:[#allocation4] sm:$0xff]
      %v185 = vld [vmem:[#allocation4 + $0x8] sm:$0xff]
      %v186 = vshll.u32 %v184, 16
      %v187 = vshll.u32 %v185, 16
      %v190 = vand.u32 %v184, 4294901760
      %v191 = vand.u32 %v185, 4294901760
      %v194 = vadd.f32 %v166, %v176
      %v195 = vadd.f32 %v167, %v177
      %v196 = vsub.f32 %v194, %v186
      %v197 = vsub.f32 %v195, %v187
      %v198 = vadd.f32 %v170, %v180
      %v199 = vadd.f32 %v171, %v181
      %v200 = vsub.f32 %v198, %v190
      %v201 = vsub.f32 %v199, %v191
      %v202 = vmul.f32 %v196, %v196
      %v203 = vmul.f32 %v197, %v197
      %v204 = vmul.f32 %v200, %v200
      %v205 = vmul.f32 %v201, %v201
      %v206 = vadd.f32 %v202, %v204
      %v207 = vadd.f32 %v203, %v205
      %vm208 = vcmask 523264
      %v209 = vsel %vm208, %v206, 0.0
      %210 = vadd.xlane.f32.xlu0 %v209
      %v211 = vpop.xlane.xlu0 %210
      %v212 = vsel %vm208, %v207, 0.0
      %213 = vadd.xlane.f32.xlu0 %v212
      %v214 = vpop.xlane.xlu0 %213
      %v215 = vrsqrt.pop %v211
      %v216 = vmul.f32 %v211, %v215
      %vm217 = vcmp.eq.f32.partialorder %v211, inf
      %v218 = vsel %vm217, %v211, %v216
      %vm219 = vcmp.eq.f32.partialorder %v211, 0.0
      %v220 = vand.u32 %v211, 2147483648
      %v221 = vsel %vm219, %v220, %v218
      %v222 = vrsqrt.pop %v214
      %v223 = vmul.f32 %v214, %v222
      %vm224 = vcmp.eq.f32.partialorder %v214, inf
      %v225 = vsel %vm224, %v214, %v223
      %vm226 = vcmp.eq.f32.partialorder %v214, 0.0
      %v227 = vand.u32 %v214, 2147483648
      %v228 = vsel %vm226, %v227, %v225
      %v229 = vsub.f32 0.0, %v221
      %v230 = vsub.f32 0.0, %v228
      %vm231 = vcmask 7168
      %232 = vst.msk [vmem:[%s64] sm:$0xff] %vm231, %v229
      %233 = vst.msk [vmem:[%s64 + $0x8] sm:$0xff] %vm231, %v230
      %s234 = smul.u32 2, %s23
      %p235 = scmp.lt.s32.totalorder %s234, 3
      %s236 = scalar_select %p235, %s234, 3
      %s237 = smul.addr %s236, 8
      %s238 = scalar_lea.vmem %s5, %s237
      // Predicated region
      $region65: #{tpu_custom_call.1} parent=11 // pred_check
        %p239 = pneg %p38
      $region66: #{tpu_custom_call.1} parent=11 // pred_check_branch
        %241 = sbr.rel (%p239) target = $region68
      $region67: #{tpu_custom_call.1} parent=11 // pred_region
        %s242 = smul.u32 2, %s23
      $region68: #{tpu_custom_call.1} parent=11 // pred_fallthru
        _
    $region12: #{tpu_custom_call.1} parent=5 // pred_fallthru
      _
    %p243 = scmp.le.s32.totalorder 1, %s23
    // Predicated region
    $region69: #{tpu_custom_call.1} parent=5 // pred_check
      %p244 = pneg %p243
    $region70: #{tpu_custom_call.1} parent=5 // pred_check_branch
      %246 = sbr.rel (%p244) target = $region72
    $region71: #{tpu_custom_call.1} parent=5 // pred_region
      %s247 = ssub.s32 %s23, 1
      // Predicated region
      $region73: #{tpu_custom_call.1} parent=71 // pred_check
        %p248 = pneg %p44
      $region74: #{tpu_custom_call.1} parent=71 // pred_check_branch
        %250 = sbr.rel (%p248) target = $region76
      $region75: #{tpu_custom_call.1} parent=71 // pred_region
        %s251 = smul.u32 2, %s28
        %p252 = scmp.lt.s32.totalorder %s251, 3
        %s253 = scalar_select %p252, %s251, 3
        %s254 = smul.addr %s253, 8
        %s255 = scalar_lea.vmem %s5, %s254
      $region76: #{tpu_custom_call.1} parent=71 // pred_fallthru
        _
    $region72: #{tpu_custom_call.1} parent=5 // pred_fallthru
      _
  $region6: #{tpu_custom_call.1} parent=0 // loop_footer
    %s27 = sadd.s32 1, %s23
  $region7: #{tpu_custom_call.1} parent=0 // loop_footer_branch
    %22 = sbr.rel target = $region3
  $region8: #{tpu_custom_call.1} parent=0 // loop_exit
    _
  %256 = vsyncmov [#allocation5]
  %s257 = vpop.sfrf %256
  %p258 = scmp.eq.s32.totalorder %s257, 0
  %p259 = pneg %p258
  %261 = shalt.err (%p259)

</llo_original>
